<compile_context>
chip_gen: v7x
topology: tpu7x:2x2x1
jax: 0.10.0
libtpu: 0.0.40
codegen_flags: <defaults>
</compile_context>

<pallas_src>
import functools
import math

import jax
import jax.numpy as jnp
from jax.experimental import pallas as pl
from jax.experimental.pallas import tpu as pltpu

LOG_STD_MIN = -20.0
LOG_STD_MAX = 2.0
_HALF_LOG_2PI = 0.5 * math.log(2.0 * math.pi)
_LOG2 = math.log(2.0)


def _tanh_gaussian_kernel(*refs, deterministic):
    if deterministic:
        seg_ref, mean_ref, log_std_ref, action_ref, logp_ref = refs
    else:
        seg_ref, mean_ref, log_std_ref, eps_ref, action_ref, logp_ref = refs

    mean = mean_ref[...].astype(jnp.float32)
    log_std = jnp.clip(log_std_ref[...].astype(jnp.float32),
                       LOG_STD_MIN, LOG_STD_MAX)

    if deterministic:
        z = mean
        lp = -log_std - _HALF_LOG_2PI
    else:
        eps = eps_ref[...].astype(jnp.float32)
        z = mean + jnp.exp(log_std) * eps          # (z - mean) / std == eps exactly
        lp = -0.5 * (eps * eps) - log_std - _HALF_LOG_2PI

    # tanh on the EUP; the tanh-Jacobian shares exp(-2|z|):
    #   log|d tanh/dz| = 2*(log2 - |z| - log1p(exp(-2|z|)))   (sign-stable softplus rewrite)
    action = jnp.tanh(z)
    a = jnp.abs(z)
    e = jnp.exp(-2.0 * a)
    lp = lp - 2.0 * (_LOG2 - a - jnp.log1p(e))

    # Per-batch-row D-sum of log-probs as a tiny segment-sum matmul on the
    # otherwise-idle MXU -> compact (TR, groups) log-prob block.
    # Keep precision=HIGHEST: needed for the f32 accumulation tolerance.
    logp_ref[...] = jnp.dot(lp, seg_ref[...],
                            preferred_element_type=jnp.float32,
                            precision=jax.lax.Precision.HIGHEST)
    action_ref[...] = action.astype(action_ref.dtype)


def _round_up(x, m):
    return ((x + m - 1) // m) * m


def _is_v7():
    try:
        return "v7" in jax.devices()[0].device_kind.lower()
    except Exception:
        return False


def reparameterized_tanh_gaussian_forward(mean, log_std, eps=None,
                                          deterministic=False,
                                          block_rows=None):
    """Returns (action_sample, log_prob) matching the PyTorch module forward.

    Stochastic mode (deterministic=False) requires caller-supplied
    eps ~ N(0, 1) of the same shape (reparameterization trick).
    """
    assert mean.shape == log_std.shape
    B, D = mean.shape
    assert D <= 128, "action_dim > 128 not supported by the lane-dense layout"
    det = bool(deterministic)
    if not det and eps is None:
        # TODO(synk): optional in-kernel PRNG (pltpu.prng_seed + prng_random_bits)
        # not implemented; stochastic mode needs caller-supplied eps ~ N(0,1).
        raise ValueError("stochastic forward requires eps ~ N(0,1); "
                         "pass eps or set deterministic=True")

    # Lane-dense layout: pad D -> next pow2 (divides 128) and B -> multiple of
    # row_unit so the (rows, 128) view has rows % 8 == 0 (clean tiling).
    d_pad = max(1, 1 << (D - 1).bit_length())
    groups = 128 // d_pad
    row_unit = 8 * groups                     # batch rows per 8 lane-dense rows
    b_pad = _round_up(B, row_unit)
    rows = b_pad // groups                    # multiple of 8

    def prep(x):
        if (b_pad, d_pad) != (B, D):
            # TODO(synk): the padded path costs an extra HBM round-trip per
            # operand; keeping producers lane-aligned (pow2 D, B % row_unit == 0)
            # makes this reshape a free view.
            x = jnp.pad(x, ((0, b_pad - B), (0, d_pad - D)))
        return x.reshape(rows, 128)

    # Segment-sum matrix: column g sums the first D lanes of group g.
    lane = jnp.arange(128, dtype=jnp.int32)[:, None]
    col = jnp.arange(groups, dtype=jnp.int32)[None, :]
    seg = ((lane // d_pad == col) & (lane % d_pad < D)).astype(jnp.float32)

    inputs = [seg, prep(mean), prep(log_std)]
    if not det:
        inputs.append(prep(eps))

    is_v7 = _is_v7()
    if block_rows is None:
        block_rows = 4096 if is_v7 else 2048   # per-generation sweet spots
    tr = max(8, (int(block_rows) // 8) * 8)
    if is_v7 and rows >= 16:
        # Guarantee >= 2 grid steps so the parallel axis shards over both TCs.
        tr = min(tr, _round_up(pl.cdiv(rows, 2), 8))
    tr = min(tr, rows)
    grid = (pl.cdiv(rows, tr),)

    seg_spec = pl.BlockSpec((128, groups), lambda i: (0, 0))   # resident constant
    data_spec = pl.BlockSpec((tr, 128), lambda i: (i, 0))

    kernel = functools.partial(_tanh_gaussian_kernel, deterministic=det)

    action, logp = pl.pallas_call(
        kernel,
        out_shape=(
            jax.ShapeDtypeStruct((rows, 128), mean.dtype),   # native dtype out
            jax.ShapeDtypeStruct((rows, groups), jnp.float32),
        ),
        grid=grid,
        in_specs=[seg_spec] + [data_spec] * (len(inputs) - 1),
        out_specs=(
            pl.BlockSpec((tr, 128), lambda i: (i, 0)),
            pl.BlockSpec((tr, groups), lambda i: (i, 0)),
        ),
        compiler_params=pltpu.CompilerParams(
            dimension_semantics=("parallel",)),
    )(*inputs)

    action = action.reshape(b_pad, d_pad)[:B, :D]
    log_prob = logp.reshape(b_pad)[:B]
    return action, log_prob


def _ref_forward(m, ls_in, e):
    ls = jnp.clip(ls_in, LOG_STD_MIN, LOG_STD_MAX)
    std = jnp.exp(ls)
    z = m + std * e
    act = jnp.tanh(z)
    lp = (-0.5 * jnp.square((z - m) / std) - ls - _HALF_LOG_2PI
          - 2.0 * (_LOG2 - z - jax.nn.softplus(-2.0 * z))).sum(-1)
    return act, lp


if __name__ == "__main__":
    key = jax.random.PRNGKey(0)
    k_mean, k_std, k_eps = jax.random.split(key, 3)

    # --- small stochastic case ------------------------------------------------
    B, D = 2, 8
    mean = jax.random.normal(k_mean, (B, D), dtype=jnp.float32)
    log_std = jax.random.normal(k_std, (B, D), dtype=jnp.float32) * 0.5
    eps = jax.random.normal(k_eps, (B, D), dtype=jnp.float32)

    action, log_prob = reparameterized_tanh_gaussian_forward(mean, log_std, eps)
    jax.block_until_ready((action, log_prob))
    ref_action, ref_lp = _ref_forward(mean, log_std, eps)
    assert action.shape == (B, D) and log_prob.shape == (B,)
    assert jnp.allclose(action, ref_action, atol=1e-5)
    assert jnp.allclose(log_prob, ref_lp, atol=1e-4)

    # --- deterministic path (no eps traffic) ----------------------------------
    d_action, d_log_prob = reparameterized_tanh_gaussian_forward(
        mean, log_std, deterministic=True)
    jax.block_until_ready((d_action, d_log_prob))
    rd_action, rd_lp = _ref_forward(mean, log_std, jnp.zeros_like(mean))
    assert jnp.allclose(d_action, rd_action, atol=1e-5)
    assert jnp.allclose(d_log_prob, rd_lp, atol=1e-4)

    # --- non-pow2 action_dim, non-aligned batch, multi-step grid --------------
    B2, D2 = 3000, 7
    k1, k2, k3 = jax.random.split(jax.random.PRNGKey(1), 3)
    m2 = jax.random.normal(k1, (B2, D2), dtype=jnp.float32)
    s2 = jax.random.normal(k2, (B2, D2), dtype=jnp.float32) * 0.5
    e2 = jax.random.normal(k3, (B2, D2), dtype=jnp.float32)
    a2, lp2 = reparameterized_tanh_gaussian_forward(m2, s2, e2, block_rows=64)
    jax.block_until_ready((a2, lp2))
    ra2, rlp2 = _ref_forward(m2, s2, e2)
    assert a2.shape == (B2, D2) and lp2.shape == (B2,)
    assert jnp.allclose(a2, ra2, atol=1e-5)
    assert jnp.allclose(lp2, rlp2, atol=1e-4)

    # --- narrow-dtype (bf16) I/O path -----------------------------------------
    B3, D3 = 64, 4
    k4, k5, k6 = jax.random.split(jax.random.PRNGKey(2), 3)
    m3 = jax.random.normal(k4, (B3, D3), dtype=jnp.bfloat16)
    s3 = (jax.random.normal(k5, (B3, D3)) * 0.5).astype(jnp.bfloat16)
    e3 = jax.random.normal(k6, (B3, D3), dtype=jnp.bfloat16)
    a3, lp3 = reparameterized_tanh_gaussian_forward(m3, s3, e3)
    jax.block_until_ready((a3, lp3))
    ra3, rlp3 = _ref_forward(m3.astype(jnp.float32), s3.astype(jnp.float32),
                             e3.astype(jnp.float32))
    assert a3.dtype == jnp.bfloat16 and lp3.dtype == jnp.float32
    assert jnp.allclose(a3.astype(jnp.float32), ra3, atol=1e-2)
    assert jnp.allclose(lp3, rlp3, atol=1e-3)

    print("KERNEL_OK")
</pallas_src>

<mosaic_0001>
module attributes {stable_mosaic.version = 11 : i64} {
  func.func @_tanh_gaussian_kernel(%arg0: i32, %arg1: memref<128x16xf32, #tpu.memory_space<vmem>>, %arg2: memref<8x128xf32, #tpu.memory_space<vmem>>, %arg3: memref<8x128xf32, #tpu.memory_space<vmem>>, %arg4: memref<8x128xf32, #tpu.memory_space<vmem>>, %arg5: memref<8x128xf32, #tpu.memory_space<vmem>>, %arg6: memref<8x16xf32, #tpu.memory_space<vmem>>) attributes {dimension_semantics = [#tpu.dimension_semantics<parallel>], iteration_bounds = array<i64: 1>, scalar_prefetch = 0 : i64, scratch_operands = 0 : i64, tpu.core_type = #tpu.core_type<tc>, window_params = [{pipeline_mode = #tpu.pipeline_mode<synchronous>, transform_indices = @transform_0, window_bounds = array<i64: 128, 16>}, {transform_indices = @transform_1, window_bounds = array<i64: 8, 128>}, {transform_indices = @transform_2, window_bounds = array<i64: 8, 128>}, {transform_indices = @transform_3, window_bounds = array<i64: 8, 128>}, {transform_indices = @transform_4, window_bounds = array<i64: 8, 128>}, {transform_indices = @transform_5, window_bounds = array<i64: 8, 16>}]} {
    %c0 = arith.constant 0 : index
    %c0_0 = arith.constant 0 : index
    %0 = vector.load %arg2[%c0, %c0_0] : memref<8x128xf32, #tpu.memory_space<vmem>>, vector<8x128xf32>
    %c0_1 = arith.constant 0 : index
    %c0_2 = arith.constant 0 : index
    %1 = vector.load %arg3[%c0_1, %c0_2] : memref<8x128xf32, #tpu.memory_space<vmem>>, vector<8x128xf32>
    %cst = arith.constant -2.000000e+01 : f32
    %cst_3 = arith.constant 2.000000e+00 : f32
    %2 = vector.broadcast %cst : f32 to vector<8x128xf32>
    %3 = arith.maximumf %2, %1 : vector<8x128xf32>
    %4 = vector.broadcast %cst_3 : f32 to vector<8x128xf32>
    %5 = arith.minimumf %4, %3 : vector<8x128xf32>
    %c0_4 = arith.constant 0 : index
    %c0_5 = arith.constant 0 : index
    %6 = vector.load %arg4[%c0_4, %c0_5] : memref<8x128xf32, #tpu.memory_space<vmem>>, vector<8x128xf32>
    %7 = math.exp %5 : vector<8x128xf32>
    %8 = arith.mulf %7, %6 : vector<8x128xf32>
    %9 = arith.addf %0, %8 : vector<8x128xf32>
    %10 = arith.mulf %6, %6 : vector<8x128xf32>
    %cst_6 = arith.constant -5.000000e-01 : f32
    %11 = vector.broadcast %cst_6 : f32 to vector<8x128xf32>
    %12 = arith.mulf %11, %10 : vector<8x128xf32>
    %13 = arith.subf %12, %5 : vector<8x128xf32>
    %cst_7 = arith.constant 0.918938517 : f32
    %14 = vector.broadcast %cst_7 : f32 to vector<8x128xf32>
    %15 = arith.subf %13, %14 : vector<8x128xf32>
    %16 = math.tanh %9 : vector<8x128xf32>
    %17 = math.absf %9 : vector<8x128xf32>
    %cst_8 = arith.constant -2.000000e+00 : f32
    %18 = vector.broadcast %cst_8 : f32 to vector<8x128xf32>
    %19 = arith.mulf %18, %17 : vector<8x128xf32>
    %20 = math.exp %19 : vector<8x128xf32>
    %cst_9 = arith.constant 0.693147182 : f32
    %21 = vector.broadcast %cst_9 : f32 to vector<8x128xf32>
    %22 = arith.subf %21, %17 : vector<8x128xf32>
    %23 = math.log1p %20 : vector<8x128xf32>
    %24 = arith.subf %22, %23 : vector<8x128xf32>
    %cst_10 = arith.constant 2.000000e+00 : f32
    %25 = vector.broadcast %cst_10 : f32 to vector<8x128xf32>
    %26 = arith.mulf %25, %24 : vector<8x128xf32>
    %27 = arith.subf %15, %26 : vector<8x128xf32>
    %c0_11 = arith.constant 0 : index
    %c0_12 = arith.constant 0 : index
    %28 = vector.load %arg1[%c0_11, %c0_12] : memref<128x16xf32, #tpu.memory_space<vmem>>, vector<128x16xf32>
    %cst_13 = arith.constant dense<0.000000e+00> : vector<8x16xf32>
    %29 = tpu.matmul %27, %28, %cst_13 {dimension_numbers = #tpu.dot_dimension_numbers<[1], [0], [0], [1], [0, 0, 1, 1], [], []>, precision = #tpu.contract_precision<fp32>} : vector<8x128xf32>, vector<128x16xf32>, vector<8x16xf32> -> vector<8x16xf32>
    %c0_14 = arith.constant 0 : index
    %c0_15 = arith.constant 0 : index
    %30 = vector.load %arg6[%c0_14, %c0_15] : memref<8x16xf32, #tpu.memory_space<vmem>>, vector<8x16xf32>
    tpu.vector_store %arg6[%c0_14, %c0_15], %29 {strides = array<i32>} : memref<8x16xf32, #tpu.memory_space<vmem>>, vector<8x16xf32>,
    %c0_16 = arith.constant 0 : index
    %c0_17 = arith.constant 0 : index
    %31 = vector.load %arg5[%c0_16, %c0_17] : memref<8x128xf32, #tpu.memory_space<vmem>>, vector<8x128xf32>
    tpu.vector_store %arg5[%c0_16, %c0_17], %16 {strides = array<i32>} : memref<8x128xf32, #tpu.memory_space<vmem>>, vector<8x128xf32>,
    return
  }
  func.func @transform_0(%arg0: i32) -> (i32, i32) {
    %c0_i32 = arith.constant 0 : i32
    %c0_i32_0 = arith.constant 0 : i32
    %c0_i32_1 = arith.constant 0 : i32
    return %c0_i32, %c0_i32_0 : i32, i32
  }
  func.func @transform_1(%arg0: i32) -> (i32, i32) {
    %c0_i32 = arith.constant 0 : i32
    %c0_i32_0 = arith.constant 0 : i32
    return %arg0, %c0_i32 : i32, i32
  }
  func.func @transform_2(%arg0: i32) -> (i32, i32) {
    %c0_i32 = arith.constant 0 : i32
    %c0_i32_0 = arith.constant 0 : i32
    return %arg0, %c0_i32 : i32, i32
  }
  func.func @transform_3(%arg0: i32) -> (i32, i32) {
    %c0_i32 = arith.constant 0 : i32
    %c0_i32_0 = arith.constant 0 : i32
    return %arg0, %c0_i32 : i32, i32
  }
  func.func @transform_4(%arg0: i32) -> (i32, i32) {
    %c0_i32 = arith.constant 0 : i32
    %c0_i32_0 = arith.constant 0 : i32
    return %arg0, %c0_i32 : i32, i32
  }
  func.func @transform_5(%arg0: i32) -> (i32, i32) {
    %c0_i32 = arith.constant 0 : i32
    %c0_i32_0 = arith.constant 0 : i32
    return %arg0, %c0_i32 : i32, i32
  }
}

</mosaic_0001>

<llo_original>
// kernel: tpu_custom_call.1
$region0: #{tpu_custom_call.1}
  #allocation0 [shape = 'u32[]', space=smem, size = 0x4, offset = 0x4, fixed_abs, tag = 'smem constant byte address 0x4 - core index']
  #allocation1 [shape = 'u32[144,128]{1,0:T(1,128)}', space=vmem, size = 0x12000, scoped, tag = 'internal scratch']
  %s0 = inlined_call_operand.vmem [shape: f32[128,16], index: 0, kind: input, shape index: {}]
  %s1 = inlined_call_operand.vmem [shape: f32[8,128], index: 1, kind: input, shape index: {}]
  %s2 = inlined_call_operand.vmem [shape: f32[8,128], index: 2, kind: input, shape index: {}]
  %s3 = inlined_call_operand.vmem [shape: f32[8,128], index: 3, kind: input, shape index: {}]
  %s4 = inlined_call_operand.hbm [shape: f32[8,128], index: 4, kind: output, shape index: {0}]
  %s5 = inlined_call_operand.hbm [shape: f32[8,16], index: 5, kind: output, shape index: {1}]
  %6 = xla_tuple %s4, %s5
  %s7 = sld [smem:[#allocation0]]
  $region34: #{tpu_custom_call.1} parent=0
    _
  %s9 = ssub.s32 1, %s7
  %s10 = scalar_select 0, %s9, %s7
  $region1: #{tpu_custom_call.1} parent=0
    #allocation2 [shape = 'u8[4096]{0}', space=vmem, size = 0x1000, scoped, tag = 'output window, operand 0, single buffered']
    #allocation3 [shape = 's32[1]{0}', space=sflag, size = 0x4, scoped, tag = 'scoped memory for tpu_custom_call.1']
    #allocation4 [shape = 'u8[4096]{0}', space=vmem, size = 0x1000, scoped, tag = 'output window, operand 1, single buffered']
    #allocation5 [shape = 's32[1]{0}', space=sflag, size = 0x4, scoped, tag = 'scoped memory for tpu_custom_call.1']
    %11 = vsyncpa [#allocation3], 0
    %12 = vsyncpa [#allocation5], 0
    // Predicated region
    $region2: #{tpu_custom_call.1} parent=1 // pred_check
      _
    $region3: #{tpu_custom_call.1} parent=1 // pred_check_branch
      %14 = sbr.rel (0) target = $region5
    $region4: #{tpu_custom_call.1} parent=1 // pred_region
      _
    $region5: #{tpu_custom_call.1} parent=1 // pred_fallthru
      _
    // Predicated region
    $region6: #{tpu_custom_call.1} parent=1 // pred_check
      _
    $region7: #{tpu_custom_call.1} parent=1 // pred_check_branch
      %16 = sbr.rel (0) target = $region9
    $region8: #{tpu_custom_call.1} parent=1 // pred_region
      _
    $region9: #{tpu_custom_call.1} parent=1 // pred_fallthru
      _
    // Predicated region
    $region10: #{tpu_custom_call.1} parent=1 // pred_check
      _
    $region11: #{tpu_custom_call.1} parent=1 // pred_check_branch
      %18 = sbr.rel (0) target = $region13
    $region12: #{tpu_custom_call.1} parent=1 // pred_region
      _
    $region13: #{tpu_custom_call.1} parent=1 // pred_fallthru
      _
    // Predicated region
    $region14: #{tpu_custom_call.1} parent=1 // pred_check
      _
    $region15: #{tpu_custom_call.1} parent=1 // pred_check_branch
      %20 = sbr.rel (0) target = $region17
    $region16: #{tpu_custom_call.1} parent=1 // pred_region
      _
    $region17: #{tpu_custom_call.1} parent=1 // pred_fallthru
      _
    %v21 = vld [vmem:[%s1] sm:$0xff]
    %v22 = vld [vmem:[%s2] sm:$0xff]
    %v23 = vmax.f32 %v22, -20.0
    %v24 = vmin.f32 %v23, 2.0
    %v25 = vld [vmem:[%s3] sm:$0xff]
    %v26 = vmul.f32 %v24, 1.442695
    %v27 = vpow.pop %v26
    %v28 = vmul.f32 %v27, %v25
    %v29 = vadd.f32 %v21, %v28
    %v30 = vmul.f32 %v25, %v25
    %v31 = vmul.f32 %v30, -0.5
    %v32 = vsub.f32 %v31, %v24
    %v33 = vsub.f32 %v32, 0.9189385
    %v34 = vtanh.pop %v29
    %v35 = vand.u32 2147483647, %v29
    %v36 = vmul.f32 %v35, -2.0
    %v37 = vmul.f32 %v36, 1.442695
    %v38 = vpow.pop %v37
    %v39 = vsub.f32 0.6931472, %v35
    %v40 = vadd.f32 %v38, 1.0
    %v41 = vlog2.pop %v40
    %v42 = vmul.f32 %v41, 0.6931472
    %v43 = vmul.f32 -0.5, %v38
    %v44 = vadd.f32 %v43, 1.0
    %v45 = vmul.f32 %v44, %v38
    %v46 = vand.u32 2147483647, %v38
    %vm47 = vcmp.lt.f32.partialorder %v46, 0.0004427343
    %v48 = vsel %vm47, %v45, %v42
    %v49 = vsub.f32 %v39, %v48
    %v50 = vmul.f32 %v49, 2.0
    %v51 = vsub.f32 %v33, %v50
    %v52 = vld [vmem:[%s0] sm:$0xff]
    %v53 = vld [vmem:[%s0 + $0x8] sm:$0xff]
    %v54 = vld [vmem:[%s0 + $0x10] sm:$0xff]
    %v55 = vld [vmem:[%s0 + $0x18] sm:$0xff]
    %v56 = vld [vmem:[%s0 + $0x20] sm:$0xff]
    %v57 = vld [vmem:[%s0 + $0x28] sm:$0xff]
    %v58 = vld [vmem:[%s0 + $0x30] sm:$0xff]
    %v59 = vld [vmem:[%s0 + $0x38] sm:$0xff]
    %v60 = vld [vmem:[%s0 + $0x40] sm:$0xff]
    %v61 = vld [vmem:[%s0 + $0x48] sm:$0xff]
    %v62 = vld [vmem:[%s0 + $0x50] sm:$0xff]
    %v63 = vld [vmem:[%s0 + $0x58] sm:$0xff]
    %v64 = vld [vmem:[%s0 + $0x60] sm:$0xff]
    %v65 = vld [vmem:[%s0 + $0x68] sm:$0xff]
    %v66 = vld [vmem:[%s0 + $0x70] sm:$0xff]
    %v67 = vld [vmem:[%s0 + $0x78] sm:$0xff]
    %68 = vmatprep.subr.mxu0 0.0
    %v69 = vand.u32 %v52, 4294901760
    %70 = vmatpush1.msra.mxu0 %v69
    %71 = vmatprep.subr.mxu0 0.0
    %v72 = vand.u32 %v53, 4294901760
    %73 = vmatpush1.msra.mxu0 %v72
    %74 = vmatprep.subr.mxu0 0.0
    %v75 = vand.u32 %v54, 4294901760
    %76 = vmatpush1.msra.mxu0 %v75
    %77 = vmatprep.subr.mxu0 0.0
    %v78 = vand.u32 %v55, 4294901760
    %79 = vmatpush1.msra.mxu0 %v78
    %80 = vmatprep.subr.mxu0 0.0
    %v81 = vand.u32 %v56, 4294901760
    %82 = vmatpush1.msra.mxu0 %v81
    %83 = vmatprep.subr.mxu0 0.0
    %v84 = vand.u32 %v57, 4294901760
    %85 = vmatpush1.msra.mxu0 %v84
    %86 = vmatprep.subr.mxu0 0.0
    %v87 = vand.u32 %v58, 4294901760
    %88 = vmatpush1.msra.mxu0 %v87
    %89 = vmatprep.subr.mxu0 0.0
    %v90 = vand.u32 %v59, 4294901760
    %91 = vmatpush1.msra.mxu0 %v90
    %92 = vmatprep.subr.mxu0 0.0
    %v93 = vand.u32 %v60, 4294901760
    %94 = vmatpush1.msra.mxu0 %v93
    %95 = vmatprep.subr.mxu0 0.0
    %v96 = vand.u32 %v61, 4294901760
    %97 = vmatpush1.msra.mxu0 %v96
    %98 = vmatprep.subr.mxu0 0.0
    %v99 = vand.u32 %v62, 4294901760
    %100 = vmatpush1.msra.mxu0 %v99
    %101 = vmatprep.subr.mxu0 0.0
    %v102 = vand.u32 %v63, 4294901760
    %103 = vmatpush1.msra.mxu0 %v102
    %104 = vmatprep.subr.mxu0 0.0
    %v105 = vand.u32 %v64, 4294901760
    %106 = vmatpush1.msra.mxu0 %v105
    %107 = vmatprep.subr.mxu0 0.0
    %v108 = vand.u32 %v65, 4294901760
    %109 = vmatpush1.msra.mxu0 %v108
    %110 = vmatprep.subr.mxu0 0.0
    %v111 = vand.u32 %v66, 4294901760
    %112 = vmatpush1.msra.mxu0 %v111
    %113 = vmatprep.subr.mxu0 0.0
    %v114 = vand.u32 %v67, 4294901760
    %115 = vmatpush1.msra.mxu0 %v114
    %116 = vmatprep.subr.mxu0 0.0
    %117 = vmatpush1.msra.mxu0 0.0
    %118 = vmatprep.subr.mxu0 0.0
    %119 = vmatpush1.msra.mxu0 0.0
    %120 = vmatprep.subr.mxu0 0.0
    %121 = vmatpush1.msra.mxu0 0.0
    %122 = vmatprep.subr.mxu0 0.0
    %123 = vmatpush1.msra.mxu0 0.0
    %124 = vmatprep.subr.mxu0 0.0
    %125 = vmatpush1.msra.mxu0 0.0
    %126 = vmatprep.subr.mxu0 0.0
    %127 = vmatpush1.msra.mxu0 0.0
    %128 = vmatprep.subr.mxu0 0.0
    %129 = vmatpush1.msra.mxu0 0.0
    %130 = vmatprep.subr.mxu0 0.0
    %131 = vmatpush1.msra.mxu0 0.0
    %132 = vmatprep.subr.mxu0 0.0
    %133 = vmatpush1.msra.mxu0 0.0
    %134 = vmatprep.subr.mxu0 0.0
    %135 = vmatpush1.msra.mxu0 0.0
    %136 = vmatprep.subr.mxu0 0.0
    %137 = vmatpush1.msra.mxu0 0.0
    %138 = vmatprep.subr.mxu0 0.0
    %139 = vmatpush1.msra.mxu0 0.0
    %140 = vmatprep.subr.mxu0 0.0
    %141 = vmatpush1.msra.mxu0 0.0
    %142 = vmatprep.subr.mxu0 0.0
    %143 = vmatpush1.msra.mxu0 0.0
    %144 = vmatprep.subr.mxu0 0.0
    %145 = vmatpush1.msra.mxu0 0.0
    %146 = vmatprep.subr.mxu0 0.0
    %147 = vmatpush1.msra.mxu0 0.0
    %148 = vmatprep.mubr.f32.mxu0 0.0
    %v149 = vand.u32 %v51, 4294901760
    %v150 = vsub.f32 %v51, %v149
    %v151 = vand.u32 %v150, 4294901760
    %v152 = vsub.f32 %v150, %v151
    %v153 = vand.u32 %v152, 4294901760
    %154 = vmatmul.mubr.f32.gmra.mrb[0].mxu0 %v153
    %v155 = vpop.f32.mrb[0].mxu0
    %v156 = vadd.f32 0.0, %v155
    %v157 = vpop.f32.mrb[0].mxu0
    %158 = vdwg.mxu0
    %159 = vmatprep.subr.mxu0 0.0
    %v160 = vand.u32 %v52, 4294901760
    %v161 = vsub.f32 %v52, %v160
    %v162 = vand.u32 %v161, 4294901760
    %v163 = vsub.f32 %v161, %v162
    %v164 = vand.u32 %v163, 4294901760
    %165 = vmatpush1.msra.mxu0 %v164
    %166 = vmatprep.subr.mxu0 0.0
    %v167 = vand.u32 %v53, 4294901760
    %v168 = vsub.f32 %v53, %v167
    %v169 = vand.u32 %v168, 4294901760
    %v170 = vsub.f32 %v168, %v169
    %v171 = vand.u32 %v170, 4294901760
    %172 = vmatpush1.msra.mxu0 %v171
    %173 = vmatprep.subr.mxu0 0.0
    %v174 = vand.u32 %v54, 4294901760
    %v175 = vsub.f32 %v54, %v174
    %v176 = vand.u32 %v175, 4294901760
    %v177 = vsub.f32 %v175, %v176
    %v178 = vand.u32 %v177, 4294901760
    %179 = vmatpush1.msra.mxu0 %v178
    %180 = vmatprep.subr.mxu0 0.0
    %v181 = vand.u32 %v55, 4294901760
    %v182 = vsub.f32 %v55, %v181
    %v183 = vand.u32 %v182, 4294901760
    %v184 = vsub.f32 %v182, %v183
    %v185 = vand.u32 %v184, 4294901760
    %186 = vmatpush1.msra.mxu0 %v185
    %187 = vmatprep.subr.mxu0 0.0
    %v188 = vand.u32 %v56, 4294901760
    %v189 = vsub.f32 %v56, %v188
    %v190 = vand.u32 %v189, 4294901760
    %v191 = vsub.f32 %v189, %v190
    %v192 = vand.u32 %v191, 4294901760
    %193 = vmatpush1.msra.mxu0 %v192
    %194 = vmatprep.subr.mxu0 0.0
    %v195 = vand.u32 %v57, 4294901760
    %v196 = vsub.f32 %v57, %v195
    %v197 = vand.u32 %v196, 4294901760
    %v198 = vsub.f32 %v196, %v197
    %v199 = vand.u32 %v198, 4294901760
    %200 = vmatpush1.msra.mxu0 %v199
    %201 = vmatprep.subr.mxu0 0.0
    %v202 = vand.u32 %v58, 4294901760
    %v203 = vsub.f32 %v58, %v202
    %v204 = vand.u32 %v203, 4294901760
    %v205 = vsub.f32 %v203, %v204
    %v206 = vand.u32 %v205, 4294901760
    %207 = vmatpush1.msra.mxu0 %v206
    %208 = vmatprep.subr.mxu0 0.0
    %v209 = vand.u32 %v59, 4294901760
    %v210 = vsub.f32 %v59, %v209
    %v211 = vand.u32 %v210, 4294901760
    %v212 = vsub.f32 %v210, %v211
    %v213 = vand.u32 %v212, 4294901760
    %214 = vmatpush1.msra.mxu0 %v213
    %215 = vmatprep.subr.mxu0 0.0
    %v216 = vand.u32 %v60, 4294901760
    %v217 = vsub.f32 %v60, %v216
    %v218 = vand.u32 %v217, 4294901760
    %v219 = vsub.f32 %v217, %v218
    %v220 = vand.u32 %v219, 4294901760
    %221 = vmatpush1.msra.mxu0 %v220
    %222 = vmatprep.subr.mxu0 0.0
    %v223 = vand.u32 %v61, 4294901760
    %v224 = vsub.f32 %v61, %v223
    %v225 = vand.u32 %v224, 4294901760
    %v226 = vsub.f32 %v224, %v225
    %v227 = vand.u32 %v226, 4294901760
    %228 = vmatpush1.msra.mxu0 %v227
    %229 = vmatprep.subr.mxu0 0.0
    %v230 = vand.u32 %v62, 4294901760
    %v231 = vsub.f32 %v62, %v230
    %v232 = vand.u32 %v231, 4294901760
    %v233 = vsub.f32 %v231, %v232
    %v234 = vand.u32 %v233, 4294901760
    %235 = vmatpush1.msra.mxu0 %v234
    %236 = vmatprep.subr.mxu0 0.0
    %v237 = vand.u32 %v63, 4294901760
    %v238 = vsub.f32 %v63, %v237
    %v239 = vand.u32 %v238, 4294901760
    %v240 = vsub.f32 %v238, %v239
    %v241 = vand.u32 %v240, 4294901760
    %242 = vmatpush1.msra.mxu0 %v241
    %243 = vmatprep.subr.mxu0 0.0
    %v244 = vand.u32 %v64, 4294901760
    %v245 = vsub.f32 %v64, %v244
    %v246 = vand.u32 %v245, 4294901760
    %v247 = vsub.f32 %v245, %v246
    %v248 = vand.u32 %v247, 4294901760
    %249 = vmatpush1.msra.mxu0 %v248
    %250 = vmatprep.subr.mxu0 0.0
    %v251 = vand.u32 %v65, 4294901760
    %v252 = vsub.f32 %v65, %v251
    %v253 = vand.u32 %v252, 4294901760
    %v254 = vsub.f32 %v252, %v253
    %v255 = vand.u32 %v254, 4294901760
    %256 = vmatpush1.msra.mxu0 %v255
    %257 = vmatprep.subr.mxu0 0.0
    %v258 = vand.u32 %v66, 4294901760
    %v259 = vsub.f32 %v66, %v258
    %v260 = vand.u32 %v259, 4294901760
    %v261 = vsub.f32 %v259, %v260
    %v262 = vand.u32 %v261, 4294901760
    %263 = vmatpush1.msra.mxu0 %v262
    %264 = vmatprep.subr.mxu0 0.0
    %v265 = vand.u32 %v67, 4294901760
    %v266 = vsub.f32 %v67, %v265
    %v267 = vand.u32 %v266, 4294901760
    %v268 = vsub.f32 %v266, %v267
    %v269 = vand.u32 %v268, 4294901760
    %270 = vmatpush1.msra.mxu0 %v269
    %271 = vmatprep.subr.mxu0 0.0
    %272 = vmatpush1.msra.mxu0 0.0
    %273 = vmatprep.subr.mxu0 0.0
    %274 = vmatpush1.msra.mxu0 0.0
    %275 = vmatprep.subr.mxu0 0.0
    %276 = vmatpush1.msra.mxu0 0.0
    %277 = vmatprep.subr.mxu0 0.0
    %278 = vmatpush1.msra.mxu0 0.0
    %279 = vmatprep.subr.mxu0 0.0
    %280 = vmatpush1.msra.mxu0 0.0
    %281 = vmatprep.subr.mxu0 0.0
    %282 = vmatpush1.msra.mxu0 0.0
    %283 = vmatprep.subr.mxu0 0.0
    %284 = vmatpush1.msra.mxu0 0.0
    %285 = vmatprep.subr.mxu0 0.0
    %286 = vmatpush1.msra.mxu0 0.0
    %287 = vmatprep.subr.mxu0 0.0
    %288 = vmatpush1.msra.mxu0 0.0
    %289 = vmatprep.subr.mxu0 0.0
    %290 = vmatpush1.msra.mxu0 0.0
    %291 = vmatprep.subr.mxu0 0.0
    %292 = vmatpush1.msra.mxu0 0.0
    %293 = vmatprep.subr.mxu0 0.0
    %294 = vmatpush1.msra.mxu0 0.0
    %295 = vmatprep.subr.mxu0 0.0
    %296 = vmatpush1.msra.mxu0 0.0
    %297 = vmatprep.subr.mxu0 0.0
    %298 = vmatpush1.msra.mxu0 0.0
    %299 = vmatprep.subr.mxu0 0.0
    %300 = vmatpush1.msra.mxu0 0.0
    %301 = vmatprep.subr.mxu0 0.0
    %302 = vmatpush1.msra.mxu0 0.0
    %303 = vmatprep.mubr.f32.mxu0 0.0
    %v304 = vand.u32 %v51, 4294901760
    %305 = vmatmul.mubr.f32.gmra.mrb[0].mxu0 %v304
    %v306 = vpop.f32.mrb[0].mxu0
    %v307 = vadd.f32 %v156, %v306
    %v308 = vpop.f32.mrb[0].mxu0
    %309 = vdwg.mxu0
    %310 = vmatprep.subr.mxu0 0.0
    %v311 = vand.u32 %v52, 4294901760
    %v312 = vsub.f32 %v52, %v311
    %313 = vmatpush1.msra.mxu0 %v312
    %314 = vmatprep.subr.mxu0 0.0
    %v315 = vand.u32 %v53, 4294901760
    %v316 = vsub.f32 %v53, %v315
    %317 = vmatpush1.msra.mxu0 %v316
    %318 = vmatprep.subr.mxu0 0.0
    %v319 = vand.u32 %v54, 4294901760
    %v320 = vsub.f32 %v54, %v319
    %321 = vmatpush1.msra.mxu0 %v320
    %322 = vmatprep.subr.mxu0 0.0
    %v323 = vand.u32 %v55, 4294901760
    %v324 = vsub.f32 %v55, %v323
    %325 = vmatpush1.msra.mxu0 %v324
    %326 = vmatprep.subr.mxu0 0.0
    %v327 = vand.u32 %v56, 4294901760
    %v328 = vsub.f32 %v56, %v327
    %329 = vmatpush1.msra.mxu0 %v328
    %330 = vmatprep.subr.mxu0 0.0
    %v331 = vand.u32 %v57, 4294901760
    %v332 = vsub.f32 %v57, %v331
    %333 = vmatpush1.msra.mxu0 %v332
    %334 = vmatprep.subr.mxu0 0.0
    %v335 = vand.u32 %v58, 4294901760
    %v336 = vsub.f32 %v58, %v335
    %337 = vmatpush1.msra.mxu0 %v336
    %338 = vmatprep.subr.mxu0 0.0
    %v339 = vand.u32 %v59, 4294901760
    %v340 = vsub.f32 %v59, %v339
    %341 = vmatpush1.msra.mxu0 %v340
    %342 = vmatprep.subr.mxu0 0.0
    %v343 = vand.u32 %v60, 4294901760
    %v344 = vsub.f32 %v60, %v343
    %345 = vmatpush1.msra.mxu0 %v344
    %346 = vmatprep.subr.mxu0 0.0
    %v347 = vand.u32 %v61, 4294901760
    %v348 = vsub.f32 %v61, %v347
    %349 = vmatpush1.msra.mxu0 %v348
    %350 = vmatprep.subr.mxu0 0.0
    %v351 = vand.u32 %v62, 4294901760
    %v352 = vsub.f32 %v62, %v351
    %353 = vmatpush1.msra.mxu0 %v352
    %354 = vmatprep.subr.mxu0 0.0
    %v355 = vand.u32 %v63, 4294901760
    %v356 = vsub.f32 %v63, %v355
    %357 = vmatpush1.msra.mxu0 %v356
    %358 = vmatprep.subr.mxu0 0.0
    %v359 = vand.u32 %v64, 4294901760
    %v360 = vsub.f32 %v64, %v359
    %361 = vmatpush1.msra.mxu0 %v360
    %362 = vmatprep.subr.mxu0 0.0
    %v363 = vand.u32 %v65, 4294901760
    %v364 = vsub.f32 %v65, %v363
    %365 = vmatpush1.msra.mxu0 %v364
    %366 = vmatprep.subr.mxu0 0.0
    %v367 = vand.u32 %v66, 4294901760
    %v368 = vsub.f32 %v66, %v367
    %369 = vmatpush1.msra.mxu0 %v368
    %370 = vmatprep.subr.mxu0 0.0
    %v371 = vand.u32 %v67, 4294901760
    %v372 = vsub.f32 %v67, %v371
    %373 = vmatpush1.msra.mxu0 %v372
    %374 = vmatprep.subr.mxu0 0.0
    %375 = vmatpush1.msra.mxu0 0.0
    %376 = vmatprep.subr.mxu0 0.0
    %377 = vmatpush1.msra.mxu0 0.0
    %378 = vmatprep.subr.mxu0 0.0
    %379 = vmatpush1.msra.mxu0 0.0
    %380 = vmatprep.subr.mxu0 0.0
    %381 = vmatpush1.msra.mxu0 0.0
    %382 = vmatprep.subr.mxu0 0.0
    %383 = vmatpush1.msra.mxu0 0.0
    %384 = vmatprep.subr.mxu0 0.0
    %385 = vmatpush1.msra.mxu0 0.0
    %386 = vmatprep.subr.mxu0 0.0
    %387 = vmatpush1.msra.mxu0 0.0
    %388 = vmatprep.subr.mxu0 0.0
    %389 = vmatpush1.msra.mxu0 0.0
    %390 = vmatprep.subr.mxu0 0.0
    %391 = vmatpush1.msra.mxu0 0.0
    %392 = vmatprep.subr.mxu0 0.0
    %393 = vmatpush1.msra.mxu0 0.0
    %394 = vmatprep.subr.mxu0 0.0
    %395 = vmatpush1.msra.mxu0 0.0
    %396 = vmatprep.subr.mxu0 0.0
    %397 = vmatpush1.msra.mxu0 0.0
    %398 = vmatprep.subr.mxu0 0.0
    %399 = vmatpush1.msra.mxu0 0.0
    %400 = vmatprep.subr.mxu0 0.0
    %401 = vmatpush1.msra.mxu0 0.0
    %402 = vmatprep.subr.mxu0 0.0
    %403 = vmatpush1.msra.mxu0 0.0
    %404 = vmatprep.subr.mxu0 0.0
    %405 = vmatpush1.msra.mxu0 0.0
    %406 = vmatprep.mubr.f32.mxu0 0.0
    %v407 = vand.u32 %v51, 4294901760
    %v408 = vsub.f32 %v51, %v407
    %409 = vmatmul.mubr.f32.gmra.mrb[0].mxu0 %v408
    %v410 = vpop.f32.mrb[0].mxu0
    %v411 = vadd.f32 %v307, %v410
    %v412 = vpop.f32.mrb[0].mxu0
    %413 = vdwg.mxu0
    %414 = vmatprep.subr.mxu0 0.0
    %v415 = vand.u32 %v52, 4294901760
    %416 = vmatpush1.msra.mxu0 %v415
    %417 = vmatprep.subr.mxu0 0.0
    %v418 = vand.u32 %v53, 4294901760
    %419 = vmatpush1.msra.mxu0 %v418
    %420 = vmatprep.subr.mxu0 0.0
    %v421 = vand.u32 %v54, 4294901760
    %422 = vmatpush1.msra.mxu0 %v421
    %423 = vmatprep.subr.mxu0 0.0
    %v424 = vand.u32 %v55, 4294901760
    %425 = vmatpush1.msra.mxu0 %v424
    %426 = vmatprep.subr.mxu0 0.0
    %v427 = vand.u32 %v56, 4294901760
    %428 = vmatpush1.msra.mxu0 %v427
    %429 = vmatprep.subr.mxu0 0.0
    %v430 = vand.u32 %v57, 4294901760
    %431 = vmatpush1.msra.mxu0 %v430
    %432 = vmatprep.subr.mxu0 0.0
    %v433 = vand.u32 %v58, 4294901760
    %434 = vmatpush1.msra.mxu0 %v433
    %435 = vmatprep.subr.mxu0 0.0
    %v436 = vand.u32 %v59, 4294901760
    %437 = vmatpush1.msra.mxu0 %v436
    %438 = vmatprep.subr.mxu0 0.0
    %v439 = vand.u32 %v60, 4294901760
    %440 = vmatpush1.msra.mxu0 %v439
    %441 = vmatprep.subr.mxu0 0.0
    %v442 = vand.u32 %v61, 4294901760
    %443 = vmatpush1.msra.mxu0 %v442
    %444 = vmatprep.subr.mxu0 0.0
    %v445 = vand.u32 %v62, 4294901760
    %446 = vmatpush1.msra.mxu0 %v445
    %447 = vmatprep.subr.mxu0 0.0
    %v448 = vand.u32 %v63, 4294901760
    %449 = vmatpush1.msra.mxu0 %v448
    %450 = vmatprep.subr.mxu0 0.0
    %v451 = vand.u32 %v64, 4294901760
    %452 = vmatpush1.msra.mxu0 %v451
    %453 = vmatprep.subr.mxu0 0.0
    %v454 = vand.u32 %v65, 4294901760
    %455 = vmatpush1.msra.mxu0 %v454
    %456 = vmatprep.subr.mxu0 0.0
    %v457 = vand.u32 %v66, 4294901760
    %458 = vmatpush1.msra.mxu0 %v457
    %459 = vmatprep.subr.mxu0 0.0
    %v460 = vand.u32 %v67, 4294901760
    %461 = vmatpush1.msra.mxu0 %v460
    %462 = vmatprep.subr.mxu0 0.0
    %463 = vmatpush1.msra.mxu0 0.0
    %464 = vmatprep.subr.mxu0 0.0
    %465 = vmatpush1.msra.mxu0 0.0
    %466 = vmatprep.subr.mxu0 0.0
    %467 = vmatpush1.msra.mxu0 0.0
    %468 = vmatprep.subr.mxu0 0.0
    %469 = vmatpush1.msra.mxu0 0.0
    %470 = vmatprep.subr.mxu0 0.0
    %471 = vmatpush1.msra.mxu0 0.0
    %472 = vmatprep.subr.mxu0 0.0
    %473 = vmatpush1.msra.mxu0 0.0
    %474 = vmatprep.subr.mxu0 0.0
    %475 = vmatpush1.msra.mxu0 0.0
    %476 = vmatprep.subr.mxu0 0.0
    %477 = vmatpush1.msra.mxu0 0.0
    %478 = vmatprep.subr.mxu0 0.0
    %479 = vmatpush1.msra.mxu0 0.0
    %480 = vmatprep.subr.mxu0 0.0
    %481 = vmatpush1.msra.mxu0 0.0
    %482 = vmatprep.subr.mxu0 0.0
    %483 = vmatpush1.msra.mxu0 0.0
    %484 = vmatprep.subr.mxu0 0.0
    %485 = vmatpush1.msra.mxu0 0.0
    %486 = vmatprep.subr.mxu0 0.0
    %487 = vmatpush1.msra.mxu0 0.0
    %488 = vmatprep.subr.mxu0 0.0
    %489 = vmatpush1.msra.mxu0 0.0
    %490 = vmatprep.subr.mxu0 0.0
    %491 = vmatpush1.msra.mxu0 0.0
    %492 = vmatprep.subr.mxu0 0.0
    %493 = vmatpush1.msra.mxu0 0.0
    %494 = vmatprep.mubr.f32.mxu0 0.0
    %v495 = vand.u32 %v51, 4294901760
    %v496 = vsub.f32 %v51, %v495
    %v497 = vand.u32 %v496, 4294901760
    %498 = vmatmul.mubr.f32.gmra.mrb[0].mxu0 %v497
    %v499 = vpop.f32.mrb[0].mxu0
    %v500 = vadd.f32 %v411, %v499
    %v501 = vpop.f32.mrb[0].mxu0
    %502 = vdwg.mxu0
    %503 = vmatprep.subr.mxu0 0.0
    %v504 = vand.u32 %v52, 4294901760
    %v505 = vsub.f32 %v52, %v504
    %v506 = vand.u32 %v505, 4294901760
    %507 = vmatpush1.msra.mxu0 %v506
    %508 = vmatprep.subr.mxu0 0.0
    %v509 = vand.u32 %v53, 4294901760
    %v510 = vsub.f32 %v53, %v509
    %v511 = vand.u32 %v510, 4294901760
    %512 = vmatpush1.msra.mxu0 %v511
    %513 = vmatprep.subr.mxu0 0.0
    %v514 = vand.u32 %v54, 4294901760
    %v515 = vsub.f32 %v54, %v514
    %v516 = vand.u32 %v515, 4294901760
    %517 = vmatpush1.msra.mxu0 %v516
    %518 = vmatprep.subr.mxu0 0.0
    %v519 = vand.u32 %v55, 4294901760
    %v520 = vsub.f32 %v55, %v519
    %v521 = vand.u32 %v520, 4294901760
    %522 = vmatpush1.msra.mxu0 %v521
    %523 = vmatprep.subr.mxu0 0.0
    %v524 = vand.u32 %v56, 4294901760
    %v525 = vsub.f32 %v56, %v524
    %v526 = vand.u32 %v525, 4294901760
    %527 = vmatpush1.msra.mxu0 %v526
    %528 = vmatprep.subr.mxu0 0.0
    %v529 = vand.u32 %v57, 4294901760
    %v530 = vsub.f32 %v57, %v529
    %v531 = vand.u32 %v530, 4294901760
    %532 = vmatpush1.msra.mxu0 %v531
    %533 = vmatprep.subr.mxu0 0.0
    %v534 = vand.u32 %v58, 4294901760
    %v535 = vsub.f32 %v58, %v534
    %v536 = vand.u32 %v535, 4294901760
    %537 = vmatpush1.msra.mxu0 %v536
    %538 = vmatprep.subr.mxu0 0.0
    %v539 = vand.u32 %v59, 4294901760
    %v540 = vsub.f32 %v59, %v539
    %v541 = vand.u32 %v540, 4294901760
    %542 = vmatpush1.msra.mxu0 %v541
    %543 = vmatprep.subr.mxu0 0.0
    %v544 = vand.u32 %v60, 4294901760
    %v545 = vsub.f32 %v60, %v544
    %v546 = vand.u32 %v545, 4294901760
    %547 = vmatpush1.msra.mxu0 %v546
    %548 = vmatprep.subr.mxu0 0.0
    %v549 = vand.u32 %v61, 4294901760
    %v550 = vsub.f32 %v61, %v549
    %v551 = vand.u32 %v550, 4294901760
    %552 = vmatpush1.msra.mxu0 %v551
    %553 = vmatprep.subr.mxu0 0.0
    %v554 = vand.u32 %v62, 4294901760
    %v555 = vsub.f32 %v62, %v554
    %v556 = vand.u32 %v555, 4294901760
    %557 = vmatpush1.msra.mxu0 %v556
    %558 = vmatprep.subr.mxu0 0.0
    %v559 = vand.u32 %v63, 4294901760
    %v560 = vsub.f32 %v63, %v559
    %v561 = vand.u32 %v560, 4294901760
    %562 = vmatpush1.msra.mxu0 %v561
    %563 = vmatprep.subr.mxu0 0.0
    %v564 = vand.u32 %v64, 4294901760
    %v565 = vsub.f32 %v64, %v564
    %v566 = vand.u32 %v565, 4294901760
    %567 = vmatpush1.msra.mxu0 %v566
    %568 = vmatprep.subr.mxu0 0.0
    %v569 = vand.u32 %v65, 4294901760
    %v570 = vsub.f32 %v65, %v569
    %v571 = vand.u32 %v570, 4294901760
    %572 = vmatpush1.msra.mxu0 %v571
    %573 = vmatprep.subr.mxu0 0.0
    %v574 = vand.u32 %v66, 4294901760
    %v575 = vsub.f32 %v66, %v574
    %v576 = vand.u32 %v575, 4294901760
    %577 = vmatpush1.msra.mxu0 %v576
    %578 = vmatprep.subr.mxu0 0.0
    %v579 = vand.u32 %v67, 4294901760
    %v580 = vsub.f32 %v67, %v579
    %v581 = vand.u32 %v580, 4294901760
    %582 = vmatpush1.msra.mxu0 %v581
    %583 = vmatprep.subr.mxu0 0.0
    %584 = vmatpush1.msra.mxu0 0.0
    %585 = vmatprep.subr.mxu0 0.0
    %586 = vmatpush1.msra.mxu0 0.0
    %587 = vmatprep.subr.mxu0 0.0
    %588 = vmatpush1.msra.mxu0 0.0
    %589 = vmatprep.subr.mxu0 0.0
    %590 = vmatpush1.msra.mxu0 0.0
    %591 = vmatprep.subr.mxu0 0.0
    %592 = vmatpush1.msra.mxu0 0.0
    %593 = vmatprep.subr.mxu0 0.0
    %594 = vmatpush1.msra.mxu0 0.0
    %595 = vmatprep.subr.mxu0 0.0
    %596 = vmatpush1.msra.mxu0 0.0
    %597 = vmatprep.subr.mxu0 0.0
    %598 = vmatpush1.msra.mxu0 0.0
    %599 = vmatprep.subr.mxu0 0.0
    %600 = vmatpush1.msra.mxu0 0.0
    %601 = vmatprep.subr.mxu0 0.0
    %602 = vmatpush1.msra.mxu0 0.0
    %603 = vmatprep.subr.mxu0 0.0
    %604 = vmatpush1.msra.mxu0 0.0
    %605 = vmatprep.subr.mxu0 0.0
    %606 = vmatpush1.msra.mxu0 0.0
    %607 = vmatprep.subr.mxu0 0.0
    %608 = vmatpush1.msra.mxu0 0.0
    %609 = vmatprep.subr.mxu0 0.0
    %610 = vmatpush1.msra.mxu0 0.0
    %611 = vmatprep.subr.mxu0 0.0
    %612 = vmatpush1.msra.mxu0 0.0
    %613 = vmatprep.subr.mxu0 0.0
    %614 = vmatpush1.msra.mxu0 0.0
    %615 = vmatprep.mubr.f32.mxu0 0.0
    %v616 = vand.u32 %v51, 4294901760
    %617 = vmatmul.mubr.f32.gmra.mrb[0].mxu0 %v616
    %v618 = vpop.f32.mrb[0].mxu0
    %v619 = vadd.f32 %v500, %v618
    %v620 = vpop.f32.mrb[0].mxu0
    %621 = vdwg.mxu0
    %622 = vmatprep.subr.mxu0 0.0
    %v623 = vand.u32 %v52, 4294901760
    %624 = vmatpush1.msra.mxu0 %v623
    %625 = vmatprep.subr.mxu0 0.0
    %v626 = vand.u32 %v53, 4294901760
    %627 = vmatpush1.msra.mxu0 %v626
    %628 = vmatprep.subr.mxu0 0.0
    %v629 = vand.u32 %v54, 4294901760
    %630 = vmatpush1.msra.mxu0 %v629
    %631 = vmatprep.subr.mxu0 0.0
    %v632 = vand.u32 %v55, 4294901760
    %633 = vmatpush1.msra.mxu0 %v632
    %634 = vmatprep.subr.mxu0 0.0
    %v635 = vand.u32 %v56, 4294901760
    %636 = vmatpush1.msra.mxu0 %v635
    %637 = vmatprep.subr.mxu0 0.0
    %v638 = vand.u32 %v57, 4294901760
    %639 = vmatpush1.msra.mxu0 %v638
    %640 = vmatprep.subr.mxu0 0.0
    %v641 = vand.u32 %v58, 4294901760
    %642 = vmatpush1.msra.mxu0 %v641
    %643 = vmatprep.subr.mxu0 0.0
    %v644 = vand.u32 %v59, 4294901760
    %645 = vmatpush1.msra.mxu0 %v644
    %646 = vmatprep.subr.mxu0 0.0
    %v647 = vand.u32 %v60, 4294901760
    %648 = vmatpush1.msra.mxu0 %v647
    %649 = vmatprep.subr.mxu0 0.0
    %v650 = vand.u32 %v61, 4294901760
    %651 = vmatpush1.msra.mxu0 %v650
    %652 = vmatprep.subr.mxu0 0.0
    %v653 = vand.u32 %v62, 4294901760
    %654 = vmatpush1.msra.mxu0 %v653
    %655 = vmatprep.subr.mxu0 0.0
    %v656 = vand.u32 %v63, 4294901760
    %657 = vmatpush1.msra.mxu0 %v656
    %658 = vmatprep.subr.mxu0 0.0
    %v659 = vand.u32 %v64, 4294901760
    %660 = vmatpush1.msra.mxu0 %v659
    %661 = vmatprep.subr.mxu0 0.0
    %v662 = vand.u32 %v65, 4294901760
    %663 = vmatpush1.msra.mxu0 %v662
    %664 = vmatprep.subr.mxu0 0.0
    %v665 = vand.u32 %v66, 4294901760
    %666 = vmatpush1.msra.mxu0 %v665
    %667 = vmatprep.subr.mxu0 0.0
    %v668 = vand.u32 %v67, 4294901760
    %669 = vmatpush1.msra.mxu0 %v668
    %670 = vmatprep.subr.mxu0 0.0
    %671 = vmatpush1.msra.mxu0 0.0
    %672 = vmatprep.subr.mxu0 0.0
    %673 = vmatpush1.msra.mxu0 0.0
    %674 = vmatprep.subr.mxu0 0.0
    %675 = vmatpush1.msra.mxu0 0.0
    %676 = vmatprep.subr.mxu0 0.0
    %677 = vmatpush1.msra.mxu0 0.0
    %678 = vmatprep.subr.mxu0 0.0
    %679 = vmatpush1.msra.mxu0 0.0
    %680 = vmatprep.subr.mxu0 0.0
    %681 = vmatpush1.msra.mxu0 0.0
    %682 = vmatprep.subr.mxu0 0.0
    %683 = vmatpush1.msra.mxu0 0.0
    %684 = vmatprep.subr.mxu0 0.0
    %685 = vmatpush1.msra.mxu0 0.0
    %686 = vmatprep.subr.mxu0 0.0
    %687 = vmatpush1.msra.mxu0 0.0
    %688 = vmatprep.subr.mxu0 0.0
    %689 = vmatpush1.msra.mxu0 0.0
    %690 = vmatprep.subr.mxu0 0.0
    %691 = vmatpush1.msra.mxu0 0.0
    %692 = vmatprep.subr.mxu0 0.0
    %693 = vmatpush1.msra.mxu0 0.0
    %694 = vmatprep.subr.mxu0 0.0
    %695 = vmatpush1.msra.mxu0 0.0
    %696 = vmatprep.subr.mxu0 0.0
    %697 = vmatpush1.msra.mxu0 0.0
    %698 = vmatprep.subr.mxu0 0.0
    %699 = vmatpush1.msra.mxu0 0.0
    %700 = vmatprep.subr.mxu0 0.0
    %701 = vmatpush1.msra.mxu0 0.0
    %702 = vmatprep.mubr.f32.mxu0 0.0
    %v703 = vand.u32 %v51, 4294901760
    %704 = vmatmul.mubr.f32.gmra.mrb[0].mxu0 %v703
    %v705 = vpop.f32.mrb[0].mxu0
    %v706 = vadd.f32 %v619, %v705
    %v707 = vpop.f32.mrb[0].mxu0
    %708 = vdwg.mxu0
    %vm709 = vcmask 130048
    %710 = vst.msk [vmem:[#allocation4] sm:$0xff] %vm709, %v706
    %711 = vst [vmem:[#allocation2] sm:$0xff] %v34
    // Predicated region
    $region18: #{tpu_custom_call.1} parent=1 // pred_check
      _
    $region19: #{tpu_custom_call.1} parent=1 // pred_check_branch
      %713 = sbr.rel (0) target = $region21
    $region20: #{tpu_custom_call.1} parent=1 // pred_region
      %s715 = ssub.s32 128, 128
      %716 = vsyncadd [#allocation3], %s715
      %s718 = sshll.u32 [#allocation2], 4
      %s719 = int_to_ptr.vmem [resolvable:$true] %s718
      %721 = dma.vmem_to_hbm [thread:$0]  %s719, 128, %s4, [#allocation3]
    $region21: #{tpu_custom_call.1} parent=1 // pred_fallthru
      _
    // Predicated region
    $region22: #{tpu_custom_call.1} parent=1 // pred_check
      _
    $region23: #{tpu_custom_call.1} parent=1 // pred_check_branch
      %723 = sbr.rel (0) target = $region25
    $region24: #{tpu_custom_call.1} parent=1 // pred_region
      %s725 = ssub.s32 128, 128
      %726 = vsyncadd [#allocation5], %s725
      %s728 = sshll.u32 [#allocation4], 4
      %s729 = int_to_ptr.vmem [resolvable:$true] %s728
      %731 = dma.vmem_to_hbm [thread:$0]  %s729, 128, %s5, [#allocation5]
    $region25: #{tpu_custom_call.1} parent=1 // pred_fallthru
      _
    // Predicated region
    $region26: #{tpu_custom_call.1} parent=1 // pred_check
      _
    $region27: #{tpu_custom_call.1} parent=1 // pred_check_branch
      %733 = sbr.rel (0) target = $region29
    $region28: #{tpu_custom_call.1} parent=1 // pred_region
      %734 = dma.done [#allocation3], 128
    $region29: #{tpu_custom_call.1} parent=1 // pred_fallthru
      _
    // Predicated region
    $region30: #{tpu_custom_call.1} parent=1 // pred_check
      _
    $region31: #{tpu_custom_call.1} parent=1 // pred_check_branch
      %736 = sbr.rel (0) target = $region33
    $region32: #{tpu_custom_call.1} parent=1 // pred_region
      %737 = dma.done [#allocation5], 128
    $region33: #{tpu_custom_call.1} parent=1 // pred_fallthru
      _
    %738 = vsyncpa [#allocation3], 1
    %739 = vsyncpa [#allocation5], 1

</llo_original>
